<compile_context>
chip_gen: v6e
topology: v6e:2x2x1
jax: 0.10.0
libtpu: 0.0.40
codegen_flags: <defaults>
</compile_context>

<pallas_src>
import functools

import jax
import jax.numpy as jnp
from jax.experimental import pallas as pl
from jax.experimental.pallas import tpu as pltpu


def _spatial_gate_kernel(att1_ref, x_ref, wc1_ref, bc1_ref, wc2_ref, bc2_ref, out_ref):
    """Per-(batch, spatial-tile) body. Activation tiles are channels-first (*, T)."""
    C = att1_ref.shape[1]

    att1 = att1_ref[0]                          # (C, 1)  per-batch channel attention, f32
    x = x_ref[0].astype(jnp.float32)            # (2C, T) bf16 in HBM -> f32 once in VMEM
    x_bev = x[:C]                               # (C, T)  free sublane split
    x_vox = x[C:]                               # (C, T)

    x_bev_1 = att1 * x_bev                      # (C, T)
    x_vox_1 = (1.0 - att1) * x_vox              # (C, T)
    fea_u1 = x_bev_1 + x_vox_1                  # (C, T)

    # spacial_leanring: 1x1 conv (+folded BN) -> ReLU -> 1x1 conv (+folded BN).
    # f32 operands, f32 accumulation; HW (T) is the MXU output/lane dimension.
    t = jnp.dot(wc1_ref[...], fea_u1, preferred_element_type=jnp.float32) + bc1_ref[...]
    t = jnp.maximum(t, 0.0)
    s1 = jnp.dot(wc2_ref[...], t, preferred_element_type=jnp.float32) + bc2_ref[...]

    att2 = jax.nn.sigmoid(s1)                   # (C, T)
    # att2*x_bev_1 + (1-att2)*x_vox_1  ==  x_vox_1 + att2*(x_bev_1 - x_vox_1)
    out_ref[0] = (x_vox_1 + att2 * (x_bev_1 - x_vox_1)).astype(out_ref.dtype)


def _pick_spatial_tile(hw, cap):
    """Pick a lane-dense spatial tile T.

    - hw % 128 == 0: largest multiple-of-128 divisor of hw that is <= cap.
    - hw % 128 != 0 and hw <= cap: single full-extent block (allowed by Pallas).
    - hw % 128 != 0 and hw  > cap: fixed 128-aligned tile `cap`; the grid uses
      cdiv(hw, T) and Pallas masks the partial tail block (no T=HW blow-up).
    """
    cap = max(128, (cap // 128) * 128)
    if hw % 128 == 0:
        for t in range(cap, 127, -128):
            if hw % t == 0:
                return t
        return 128
    if hw <= cap:
        return hw
    return cap


def channel_spatial_stage_pallas(x_nchw, params, *, spatial_tile_cap=2048):
    """x_nchw: (B, 2C, H, W) float32. params: BN-folded weights (see __main__)."""
    w1, b1, w2, b2, wc1, bc1, wc2, bc2 = params
    B, F, H, W = x_nchw.shape
    C = F // 2
    HW = H * W

    # Channels-first, spatially flattened, bf16 in HBM (halves kernel input traffic).
    x_flat = x_nchw.reshape(B, F, HW).astype(jnp.bfloat16)

    # --- Channel-attention branch hoisted out of the kernel (O(B*C) work, plain XLA) ---
    fea_s = jnp.mean(x_flat, axis=2, dtype=jnp.float32)            # (B, 2C), f32 accum
    h = jnp.maximum(fea_s @ w1 + b1, 0.0)
    att1 = jax.nn.sigmoid(h @ w2 + b2)                             # (B, C)
    att1 = att1[:, :, None].astype(jnp.float32)                    # (B, C, 1)

    # 1x1-conv weights transposed for channels-first matmul; kept f32 (tiny, revisited).
    wc1_t = wc1.T.astype(jnp.float32)                              # (C_out, C_in)
    wc2_t = wc2.T.astype(jnp.float32)
    bc1_c = bc1.reshape(C, 1).astype(jnp.float32)
    bc2_c = bc2.reshape(C, 1).astype(jnp.float32)

    # Large channel counts get a smaller tile cap so the tile budget also fits v7x
    # (64 MiB VMEM); v5e/v6e (128 MiB) are comfortable either way.
    cap = spatial_tile_cap if C < 256 else min(spatial_tile_cap, 1024)
    T = _pick_spatial_tile(HW, cap)
    n_sp = pl.cdiv(HW, T)

    # VMEM budget from the actual tile footprint:
    #   double-buffered bf16 (2C,T) input + f32 (C,T) output, live f32 intermediates,
    #   revisited weights, plus slack.
    tile_bytes = (2 * (2 * C * T * 2 + C * T * 4)
                  + 8 * C * T * 4
                  + 2 * C * C * 4 + 4 * C * 4
                  + (2 << 20))
    vmem_limit = int(min(max(tile_bytes, 32 << 20), 96 << 20))

    out_flat = pl.pallas_call(
        _spatial_gate_kernel,
        out_shape=jax.ShapeDtypeStruct((B, C, HW), jnp.float32),
        grid_spec=pltpu.PrefetchScalarGridSpec(
            num_scalar_prefetch=0,
            grid=(B, n_sp),
            in_specs=[
                pl.BlockSpec((1, C, 1), lambda b, s: (b, 0, 0)),        # att1 (per batch)
                pl.BlockSpec((1, 2 * C, T), lambda b, s: (b, 0, s)),    # x (bev|vox), bf16
                pl.BlockSpec((C, C), lambda b, s: (0, 0)),              # wc1^T (revisited)
                pl.BlockSpec((C, 1), lambda b, s: (0, 0)),              # bc1
                pl.BlockSpec((C, C), lambda b, s: (0, 0)),              # wc2^T (revisited)
                pl.BlockSpec((C, 1), lambda b, s: (0, 0)),              # bc2
            ],
            out_specs=pl.BlockSpec((1, C, T), lambda b, s: (b, 0, s)),
        ),
        compiler_params=pltpu.CompilerParams(
            dimension_semantics=("parallel", "parallel"),
            vmem_limit_bytes=vmem_limit,
        ),
    )(att1, x_flat, wc1_t, bc1_c, wc2_t, bc2_c)

    # (B, C, HW) -> (B, C, H, W): free reshape.
    return out_flat.reshape(B, C, H, W)


def _fold_bn(w, b, gamma, beta, mean, var, eps=1e-5):
    """Fold eval-mode BatchNorm into a preceding 1x1 conv. w: (C_in, C_out), b: (C_out,)."""
    scale = gamma / jnp.sqrt(var + eps)
    return w * scale[None, :], b * scale + (beta - mean * scale)


def _reference(x_nchw, params, C):
    """Pure-JAX f32 reference mirroring the PyTorch forward (eval-mode BN)."""
    w1, b1, w2, b2, wc1, bc1, wc2, bc2 = params
    fea_s = x_nchw.mean(axis=(-1, -2))                               # (B, 2C)
    h = jnp.maximum(fea_s @ w1 + b1, 0.0)
    att1 = jax.nn.sigmoid(h @ w2 + b2)[:, :, None, None]             # (B, C, 1, 1)
    x_bev, x_voxel = x_nchw[:, :C], x_nchw[:, C:]
    x_bev_1 = att1 * x_bev
    x_voxel_1 = (1.0 - att1) * x_voxel
    u1 = x_bev_1 + x_voxel_1
    t = jnp.einsum("bchw,cd->bdhw", u1, wc1,
                   preferred_element_type=jnp.float32) + bc1[None, :, None, None]
    t = jnp.maximum(t, 0.0)
    s1 = jnp.einsum("bchw,cd->bdhw", t, wc2,
                    preferred_element_type=jnp.float32) + bc2[None, :, None, None]
    att2 = jax.nn.sigmoid(s1)
    return att2 * x_bev_1 + (1.0 - att2) * x_voxel_1


if __name__ == "__main__":
    # Small shapes consistent with the module: features must be >= 16 (reduction=16).
    B, features, H, W = 2, 32, 16, 16
    C = features // 2            # 16
    hidden = features // 16      # 2

    key = jax.random.PRNGKey(0)
    keys = jax.random.split(key, 13)

    x = jax.random.normal(keys[0], (B, features, H, W), dtype=jnp.float32)

    # fc: Linear(features, hidden) -> ReLU -> Linear(hidden, C) -> Sigmoid
    w1 = 0.2 * jax.random.normal(keys[1], (features, hidden), dtype=jnp.float32)
    b1 = 0.1 * jax.random.normal(keys[2], (hidden,), dtype=jnp.float32)
    w2 = 0.2 * jax.random.normal(keys[3], (hidden, C), dtype=jnp.float32)
    b2 = 0.1 * jax.random.normal(keys[4], (C,), dtype=jnp.float32)

    # spacial_leanring: Conv1x1(C,C) + BN + ReLU + Conv1x1(C,C) + BN
    # 1x1 conv weights stored as (C_in, C_out); BatchNorm folded in eval mode.
    # TODO(synk): PyTorch BatchNorm2d in training mode uses batch statistics; here BN
    # is applied in eval mode (running stats) and folded into the 1x1 convs.
    wc1_raw = 0.2 * jax.random.normal(keys[5], (C, C), dtype=jnp.float32)
    bc1_raw = 0.1 * jax.random.normal(keys[6], (C,), dtype=jnp.float32)
    wc2_raw = 0.2 * jax.random.normal(keys[7], (C, C), dtype=jnp.float32)
    bc2_raw = 0.1 * jax.random.normal(keys[8], (C,), dtype=jnp.float32)

    gamma1 = 1.0 + 0.1 * jax.random.normal(keys[9], (C,), dtype=jnp.float32)
    beta1 = 0.05 * jax.random.normal(keys[10], (C,), dtype=jnp.float32)
    mean1 = 0.1 * jnp.arange(C, dtype=jnp.float32) / C
    var1 = 1.0 + 0.05 * jnp.arange(C, dtype=jnp.float32) / C
    gamma2 = 1.0 + 0.1 * jax.random.normal(keys[11], (C,), dtype=jnp.float32)
    beta2 = jnp.zeros((C,), dtype=jnp.float32)
    mean2 = jnp.zeros((C,), dtype=jnp.float32)
    var2 = jnp.ones((C,), dtype=jnp.float32)

    wc1, bc1 = _fold_bn(wc1_raw, bc1_raw, gamma1, beta1, mean1, var1)
    wc2, bc2 = _fold_bn(wc2_raw, bc2_raw, gamma2, beta2, mean2, var2)

    params = (w1, b1, w2, b2, wc1, bc1, wc2, bc2)

    # spatial_tile_cap=128 so the toy test (HW=256) still exercises a 2-D grid
    # (2 batches x 2 spatial tiles); real BEV maps use the default 2048-lane cap.
    fwd = jax.jit(functools.partial(channel_spatial_stage_pallas, spatial_tile_cap=128))
    out = jax.block_until_ready(fwd(x, params))
    assert out.shape == (B, C, H, W), out.shape

    # The only numerics difference vs. PyTorch f32 is the bf16 quantization of the
    # activations in HBM.  Tight check against an f32 reference fed the bf16-quantized
    # input; loose check against the exact-f32 reference on the original input.
    x_q = x.astype(jnp.bfloat16).astype(jnp.float32)
    ref_q = _reference(x_q, params, C)
    assert jnp.allclose(out, ref_q, rtol=5e-3, atol=5e-3), \
        float(jnp.max(jnp.abs(out - ref_q)))

    ref_f32 = _reference(x, params, C)
    assert jnp.allclose(out, ref_f32, rtol=5e-2, atol=5e-2), \
        float(jnp.max(jnp.abs(out - ref_f32)))

    # Second shape with HW not a multiple of 128 (15x15 = 225) to exercise the fixed
    # cdiv grid + masked tail path (the former T=HW fallback / OOM cliff).
    x2 = jax.random.normal(keys[12], (B, features, 15, 15), dtype=jnp.float32)
    out2 = jax.block_until_ready(fwd(x2, params))
    assert out2.shape == (B, C, 15, 15), out2.shape
    x2_q = x2.astype(jnp.bfloat16).astype(jnp.float32)
    ref2_q = _reference(x2_q, params, C)
    assert jnp.allclose(out2, ref2_q, rtol=5e-3, atol=5e-3), \
        float(jnp.max(jnp.abs(out2 - ref2_q)))

    print("KERNEL_OK")
</pallas_src>

<mosaic_0001>
module attributes {stable_mosaic.version = 11 : i64} {
  func.func @_spatial_gate_kernel(%arg0: i32, %arg1: i32, %arg2: memref<1x16x1xf32, #tpu.memory_space<vmem>>, %arg3: memref<1x32x128xbf16, #tpu.memory_space<vmem>>, %arg4: memref<16x16xf32, #tpu.memory_space<vmem>>, %arg5: memref<16x1xf32, #tpu.memory_space<vmem>>, %arg6: memref<16x16xf32, #tpu.memory_space<vmem>>, %arg7: memref<16x1xf32, #tpu.memory_space<vmem>>, %arg8: memref<1x16x128xf32, #tpu.memory_space<vmem>>) attributes {dimension_semantics = [#tpu.dimension_semantics<parallel>, #tpu.dimension_semantics<parallel>], iteration_bounds = array<i64: 2, 2>, scalar_prefetch = 0 : i64, scratch_operands = 0 : i64, tpu.core_type = #tpu.core_type<tc>, window_params = [{transform_indices = @transform_0, window_bounds = array<i64: 1, 16, 1>}, {transform_indices = @transform_1, window_bounds = array<i64: 1, 32, 128>}, {pipeline_mode = #tpu.pipeline_mode<synchronous>, transform_indices = @transform_2, window_bounds = array<i64: 16, 16>}, {pipeline_mode = #tpu.pipeline_mode<synchronous>, transform_indices = @transform_3, window_bounds = array<i64: 16, 1>}, {pipeline_mode = #tpu.pipeline_mode<synchronous>, transform_indices = @transform_4, window_bounds = array<i64: 16, 16>}, {pipeline_mode = #tpu.pipeline_mode<synchronous>, transform_indices = @transform_5, window_bounds = array<i64: 16, 1>}, {transform_indices = @transform_6, window_bounds = array<i64: 1, 16, 128>}]} {
    %c0 = arith.constant 0 : index
    %c0_0 = arith.constant 0 : index
    %c0_1 = arith.constant 0 : index
    %0 = vector.load %arg2[%c0, %c0_0, %c0_1] : memref<1x16x1xf32, #tpu.memory_space<vmem>>, vector<1x16x1xf32>
    %1 = vector.shape_cast %0 : vector<1x16x1xf32> to vector<16x1xf32>
    %c0_2 = arith.constant 0 : index
    %c0_3 = arith.constant 0 : index
    %c0_4 = arith.constant 0 : index
    %2 = vector.load %arg3[%c0_2, %c0_3, %c0_4] : memref<1x32x128xbf16, #tpu.memory_space<vmem>>, vector<1x32x128xbf16>
    %3 = vector.shape_cast %2 : vector<1x32x128xbf16> to vector<32x128xbf16>
    %4 = arith.extf %3 : vector<32x128xbf16> to vector<32x128xf32>
    %5 = vector.extract_strided_slice %4 {offsets = [0, 0], sizes = [16, 128], strides = [1, 1]} : vector<32x128xf32> to vector<16x128xf32>
    %6 = vector.extract_strided_slice %4 {offsets = [16, 0], sizes = [16, 128], strides = [1, 1]} : vector<32x128xf32> to vector<16x128xf32>
    %7 = vector.broadcast %1 : vector<16x1xf32> to vector<16x128xf32>
    %8 = arith.mulf %7, %5 : vector<16x128xf32>
    %cst = arith.constant 1.000000e+00 : f32
    %9 = vector.broadcast %cst : f32 to vector<16x1xf32>
    %10 = arith.subf %9, %1 : vector<16x1xf32>
    %11 = vector.broadcast %10 : vector<16x1xf32> to vector<16x128xf32>
    %12 = arith.mulf %11, %6 : vector<16x128xf32>
    %13 = arith.addf %8, %12 : vector<16x128xf32>
    %c0_5 = arith.constant 0 : index
    %c0_6 = arith.constant 0 : index
    %14 = vector.load %arg4[%c0_5, %c0_6] : memref<16x16xf32, #tpu.memory_space<vmem>>, vector<16x16xf32>
    %cst_7 = arith.constant dense<0.000000e+00> : vector<16x128xf32>
    %15 = tpu.matmul %14, %13, %cst_7 {dimension_numbers = #tpu.dot_dimension_numbers<[1], [0], [0], [1], [0, 0, 1, 1], [], []>} : vector<16x16xf32>, vector<16x128xf32>, vector<16x128xf32> -> vector<16x128xf32>
    %c0_8 = arith.constant 0 : index
    %c0_9 = arith.constant 0 : index
    %16 = vector.load %arg5[%c0_8, %c0_9] : memref<16x1xf32, #tpu.memory_space<vmem>>, vector<16x1xf32>
    %17 = vector.broadcast %16 : vector<16x1xf32> to vector<16x128xf32>
    %18 = arith.addf %15, %17 : vector<16x128xf32>
    %cst_10 = arith.constant 0.000000e+00 : f32
    %19 = vector.broadcast %cst_10 : f32 to vector<16x128xf32>
    %20 = arith.maximumf %18, %19 : vector<16x128xf32>
    %c0_11 = arith.constant 0 : index
    %c0_12 = arith.constant 0 : index
    %21 = vector.load %arg6[%c0_11, %c0_12] : memref<16x16xf32, #tpu.memory_space<vmem>>, vector<16x16xf32>
    %cst_13 = arith.constant dense<0.000000e+00> : vector<16x128xf32>
    %22 = tpu.matmul %21, %20, %cst_13 {dimension_numbers = #tpu.dot_dimension_numbers<[1], [0], [0], [1], [0, 0, 1, 1], [], []>} : vector<16x16xf32>, vector<16x128xf32>, vector<16x128xf32> -> vector<16x128xf32>
    %c0_14 = arith.constant 0 : index
    %c0_15 = arith.constant 0 : index
    %23 = vector.load %arg7[%c0_14, %c0_15] : memref<16x1xf32, #tpu.memory_space<vmem>>, vector<16x1xf32>
    %24 = vector.broadcast %23 : vector<16x1xf32> to vector<16x128xf32>
    %25 = arith.addf %22, %24 : vector<16x128xf32>
    %26 = arith.negf %25 : vector<16x128xf32>
    %27 = math.exp %26 : vector<16x128xf32>
    %cst_16 = arith.constant 1.000000e+00 : f32
    %28 = vector.broadcast %cst_16 : f32 to vector<16x128xf32>
    %29 = arith.addf %28, %27 : vector<16x128xf32>
    %30 = arith.divf %28, %29 : vector<16x128xf32>
    %31 = arith.subf %8, %12 : vector<16x128xf32>
    %32 = arith.mulf %30, %31 : vector<16x128xf32>
    %33 = arith.addf %12, %32 : vector<16x128xf32>
    %c0_17 = arith.constant 0 : index
    %c0_18 = arith.constant 0 : index
    %c0_19 = arith.constant 0 : index
    %34 = vector.load %arg8[%c0_17, %c0_18, %c0_19] : memref<1x16x128xf32, #tpu.memory_space<vmem>>, vector<1x16x128xf32>
    %35 = vector.shape_cast %34 : vector<1x16x128xf32> to vector<16x128xf32>
    %36 = vector.shape_cast %33 : vector<16x128xf32> to vector<1x16x128xf32>
    tpu.vector_store %arg8[%c0_17, %c0_18, %c0_19], %36 {strides = array<i32>} : memref<1x16x128xf32, #tpu.memory_space<vmem>>, vector<1x16x128xf32>,
    return
  }
  func.func @transform_0(%arg0: i32, %arg1: i32) -> (i32, i32, i32) {
    %c0_i32 = arith.constant 0 : i32
    %c0_i32_0 = arith.constant 0 : i32
    %c0_i32_1 = arith.constant 0 : i32
    return %arg0, %c0_i32, %c0_i32_0 : i32, i32, i32
  }
  func.func @transform_1(%arg0: i32, %arg1: i32) -> (i32, i32, i32) {
    %c0_i32 = arith.constant 0 : i32
    %c0_i32_0 = arith.constant 0 : i32
    return %arg0, %c0_i32, %arg1 : i32, i32, i32
  }
  func.func @transform_2(%arg0: i32, %arg1: i32) -> (i32, i32) {
    %c0_i32 = arith.constant 0 : i32
    %c0_i32_0 = arith.constant 0 : i32
    %c0_i32_1 = arith.constant 0 : i32
    return %c0_i32, %c0_i32_0 : i32, i32
  }
  func.func @transform_3(%arg0: i32, %arg1: i32) -> (i32, i32) {
    %c0_i32 = arith.constant 0 : i32
    %c0_i32_0 = arith.constant 0 : i32
    %c0_i32_1 = arith.constant 0 : i32
    return %c0_i32, %c0_i32_0 : i32, i32
  }
  func.func @transform_4(%arg0: i32, %arg1: i32) -> (i32, i32) {
    %c0_i32 = arith.constant 0 : i32
    %c0_i32_0 = arith.constant 0 : i32
    %c0_i32_1 = arith.constant 0 : i32
    return %c0_i32, %c0_i32_0 : i32, i32
  }
  func.func @transform_5(%arg0: i32, %arg1: i32) -> (i32, i32) {
    %c0_i32 = arith.constant 0 : i32
    %c0_i32_0 = arith.constant 0 : i32
    %c0_i32_1 = arith.constant 0 : i32
    return %c0_i32, %c0_i32_0 : i32, i32
  }
  func.func @transform_6(%arg0: i32, %arg1: i32) -> (i32, i32, i32) {
    %c0_i32 = arith.constant 0 : i32
    %c0_i32_0 = arith.constant 0 : i32
    return %arg0, %c0_i32, %arg1 : i32, i32, i32
  }
}

</mosaic_0001>

<llo_original>
// kernel: channel_spatial_stage_pallas.1
$region0: #{channel_spatial_stage_pallas.1}
  #allocation0 [shape = 'u32[]', space=smem, size = 0x4, offset = 0x4, fixed_abs, tag = 'smem constant byte address 0x4 - core index']
  #allocation1 [shape = 'u32[144,128]{1,0:T(1,128)}', space=vmem, size = 0x12000, scoped, tag = 'internal scratch']
  %s0 = inlined_call_operand.vmem [shape: f32[2,16,1], index: 0, kind: input, shape index: {}]
  %s1 = inlined_call_operand.vmem [shape: bf16[2,32,256], index: 1, kind: input, shape index: {}]
  %s2 = inlined_call_operand.vmem [shape: f32[16,16], index: 2, kind: input, shape index: {}]
  %s3 = inlined_call_operand.vmem [shape: f32[16,1], index: 3, kind: input, shape index: {}]
  %s4 = inlined_call_operand.vmem [shape: f32[16,16], index: 4, kind: input, shape index: {}]
  %s5 = inlined_call_operand.vmem [shape: f32[16,1], index: 5, kind: input, shape index: {}]
  %s6 = inlined_call_operand.vmem [shape: f32[2,16,256], index: 6, kind: output, shape index: {}]
  %s7 = sld [smem:[#allocation0]]
  $region132: #{channel_spatial_stage_pallas.1} parent=0
    _
  %s9 = ssub.s32 1, %s7
  %s10 = scalar_select 0, %s9, %s7
  $region1: #{channel_spatial_stage_pallas.1} parent=0
    #allocation2 [shape = 'u8[16384]{0}', space=vmem, size = 0x4000, scoped, tag = 'input window, operand 1']
    #allocation3 [shape = 'u8[16384]{0}', space=vmem, size = 0x4000, scoped, tag = 'output window, operand 0']
    loop: start=0, step=1, limit=6
    $region2: #{channel_spatial_stage_pallas.1} parent=1 // loop_pre_header
      _
    $region3: #{channel_spatial_stage_pallas.1} parent=1 // loop_header
      %s12 = sphi 0, %s16
      %p13 = scmp.ge.s32.totalorder %s12, 6
      %s19 = sphi 0, %s31
      %s20 = sphi 0, %s27
      %s21 = sphi 0, %s19
      %s22 = sphi 0, %s20
      %s23 = sphi 0, %s21
      %s24 = sphi 0, %s22
      %s34 = sphi 0, %s36
      %s37 = sphi 0, %s34
      %s38 = sphi 0, %s37
      %s54 = sphi 0, %s38
      %s62 = sphi 0, %s64
      %s65 = sphi 0, %s62
      %s66 = sphi 0, %s65
      %s82 = sphi 0, %s66
      %s86 = sphi 0, %s86
      %s88 = sphi 0, %s86
      %s89 = sphi 0, %s88
      %s103 = sphi 0, %s89
      %s107 = sphi 0, %s107
      %s109 = sphi 0, %s107
      %s110 = sphi 0, %s109
      %s124 = sphi 0, %s110
      %s128 = sphi 0, %s128
      %s130 = sphi 0, %s128
      %s131 = sphi 0, %s130
      %s145 = sphi 0, %s131
      %s149 = sphi 0, %s149
      %s151 = sphi 0, %s149
      %s152 = sphi 0, %s151
      %s166 = sphi 0, %s152
      %s174 = sphi 0, %s176
      %s177 = sphi 0, %s174
      %s178 = sphi 0, %s177
      %s194 = sphi 0, %s178
    $region4: #{channel_spatial_stage_pallas.1} parent=1 // loop_header_branch
      %15 = sbr.rel (%p13) target = $region8
    $region5: #{channel_spatial_stage_pallas.1} parent=1 // loop_body
      %s17 = ssub.s32 %s12, 1
      %s18 = ssub.s32 %s12, 2
      %s25 = sadd.s32 1, %s20
      %p26 = scmp.ge.s32.totalorder %s25, 2
      %s27 = scalar_select %p26, 0, %s25
      %s28 = sadd.s32 1, %s19
      %s29 = scalar_select %p26, %s28, %s19
      %p30 = scmp.ge.s32.totalorder %s29, 2
      %s31 = scalar_select %p30, 0, %s29
      %s32 = ssub.s32 %s19, %s31
      %p33 = scmp.eq.s32.totalorder %s32, 0
      %s35 = sadd.s32 %s34, 1
      %s36 = scalar_select %p33, %s34, %s35
      %p39 = pneg %p33
      %p40 = scmp.eq.s32.totalorder %s12, 3
      %p41 = por %p39, %p40
      %p42 = scmp.ne.s32.totalorder %s34, %s37
      %p43 = scmp.eq.s32.totalorder %s12, 0
      %p44 = por %p42, %p43
      %p45 = scmp.ne.s32.totalorder %s34, %s37
      %p46 = scmp.eq.s32.totalorder %s17, 3
      %p47 = por %p45, %p46
      %p48 = scmp.ne.s32.totalorder %s37, %s38
      %p49 = scmp.eq.s32.totalorder %s17, 0
      %p50 = por %p48, %p49
      %p51 = scmp.ne.s32.totalorder %s37, %s38
      %p52 = scmp.eq.s32.totalorder %s18, 3
      %p53 = por %p51, %p52
      %p55 = scmp.ne.s32.totalorder %s38, %s54
      %p56 = scmp.eq.s32.totalorder %s18, 0
      %p57 = por %p55, %p56
      %s58 = ssub.s32 %s19, %s31
      %s59 = ssub.s32 %s20, %s27
      %s60 = sor.u32 %s58, %s59
      %p61 = scmp.eq.s32.totalorder %s60, 0
      %s63 = sadd.s32 %s62, 1
      %s64 = scalar_select %p61, %s62, %s63
      %p67 = pneg %p61
      %p68 = scmp.eq.s32.totalorder %s12, 3
      %p69 = por %p67, %p68
      %p70 = scmp.ne.s32.totalorder %s62, %s65
      %p71 = scmp.eq.s32.totalorder %s12, 0
      %p72 = por %p70, %p71
      %p73 = scmp.ne.s32.totalorder %s62, %s65
      %p74 = scmp.eq.s32.totalorder %s17, 3
      %p75 = por %p73, %p74
      %p76 = scmp.ne.s32.totalorder %s65, %s66
      %p77 = scmp.eq.s32.totalorder %s17, 0
      %p78 = por %p76, %p77
      %p79 = scmp.ne.s32.totalorder %s65, %s66
      %p80 = scmp.eq.s32.totalorder %s18, 3
      %p81 = por %p79, %p80
      %p83 = scmp.ne.s32.totalorder %s66, %s82
      %p84 = scmp.eq.s32.totalorder %s18, 0
      %p85 = por %p83, %p84
      %s87 = sadd.s32 %s86, 1
      %p90 = scmp.eq.s32.totalorder %s12, 3
      %p91 = scmp.ne.s32.totalorder %s86, %s88
      %p92 = scmp.eq.s32.totalorder %s12, 0
      %p93 = por %p91, %p92
      %p94 = scmp.ne.s32.totalorder %s86, %s88
      %p95 = scmp.eq.s32.totalorder %s17, 3
      %p96 = por %p94, %p95
      %p97 = scmp.ne.s32.totalorder %s88, %s89
      %p98 = scmp.eq.s32.totalorder %s17, 0
      %p99 = por %p97, %p98
      %p100 = scmp.ne.s32.totalorder %s88, %s89
      %p101 = scmp.eq.s32.totalorder %s18, 3
      %p102 = por %p100, %p101
      %p104 = scmp.ne.s32.totalorder %s89, %s103
      %p105 = scmp.eq.s32.totalorder %s18, 0
      %p106 = por %p104, %p105
      %s108 = sadd.s32 %s107, 1
      %p111 = scmp.eq.s32.totalorder %s12, 3
      %p112 = scmp.ne.s32.totalorder %s107, %s109
      %p113 = scmp.eq.s32.totalorder %s12, 0
      %p114 = por %p112, %p113
      %p115 = scmp.ne.s32.totalorder %s107, %s109
      %p116 = scmp.eq.s32.totalorder %s17, 3
      %p117 = por %p115, %p116
      %p118 = scmp.ne.s32.totalorder %s109, %s110
      %p119 = scmp.eq.s32.totalorder %s17, 0
      %p120 = por %p118, %p119
      %p121 = scmp.ne.s32.totalorder %s109, %s110
      %p122 = scmp.eq.s32.totalorder %s18, 3
      %p123 = por %p121, %p122
      %p125 = scmp.ne.s32.totalorder %s110, %s124
      %p126 = scmp.eq.s32.totalorder %s18, 0
      %p127 = por %p125, %p126
      %s129 = sadd.s32 %s128, 1
      %p132 = scmp.eq.s32.totalorder %s12, 3
      %p133 = scmp.ne.s32.totalorder %s128, %s130
      %p134 = scmp.eq.s32.totalorder %s12, 0
      %p135 = por %p133, %p134
      %p136 = scmp.ne.s32.totalorder %s128, %s130
      %p137 = scmp.eq.s32.totalorder %s17, 3
      %p138 = por %p136, %p137
      %p139 = scmp.ne.s32.totalorder %s130, %s131
      %p140 = scmp.eq.s32.totalorder %s17, 0
      %p141 = por %p139, %p140
      %p142 = scmp.ne.s32.totalorder %s130, %s131
      %p143 = scmp.eq.s32.totalorder %s18, 3
      %p144 = por %p142, %p143
      %p146 = scmp.ne.s32.totalorder %s131, %s145
      %p147 = scmp.eq.s32.totalorder %s18, 0
      %p148 = por %p146, %p147
      %s150 = sadd.s32 %s149, 1
      %p153 = scmp.eq.s32.totalorder %s12, 3
      %p154 = scmp.ne.s32.totalorder %s149, %s151
      %p155 = scmp.eq.s32.totalorder %s12, 0
      %p156 = por %p154, %p155
      %p157 = scmp.ne.s32.totalorder %s149, %s151
      %p158 = scmp.eq.s32.totalorder %s17, 3
      %p159 = por %p157, %p158
      %p160 = scmp.ne.s32.totalorder %s151, %s152
      %p161 = scmp.eq.s32.totalorder %s17, 0
      %p162 = por %p160, %p161
      %p163 = scmp.ne.s32.totalorder %s151, %s152
      %p164 = scmp.eq.s32.totalorder %s18, 3
      %p165 = por %p163, %p164
      %p167 = scmp.ne.s32.totalorder %s152, %s166
      %p168 = scmp.eq.s32.totalorder %s18, 0
      %p169 = por %p167, %p168
      %s170 = ssub.s32 %s19, %s31
      %s171 = ssub.s32 %s20, %s27
      %s172 = sor.u32 %s170, %s171
      %p173 = scmp.eq.s32.totalorder %s172, 0
      %s175 = sadd.s32 %s174, 1
      %s176 = scalar_select %p173, %s174, %s175
      %p179 = pneg %p173
      %p180 = scmp.eq.s32.totalorder %s12, 3
      %p181 = por %p179, %p180
      %p182 = scmp.ne.s32.totalorder %s174, %s177
      %p183 = scmp.eq.s32.totalorder %s12, 0
      %p184 = por %p182, %p183
      %p185 = scmp.ne.s32.totalorder %s174, %s177
      %p186 = scmp.eq.s32.totalorder %s17, 3
      %p187 = por %p185, %p186
      %p188 = scmp.ne.s32.totalorder %s177, %s178
      %p189 = scmp.eq.s32.totalorder %s17, 0
      %p190 = por %p188, %p189
      %p191 = scmp.ne.s32.totalorder %s177, %s178
      %p192 = scmp.eq.s32.totalorder %s18, 3
      %p193 = por %p191, %p192
      %p195 = scmp.ne.s32.totalorder %s178, %s194
      %p196 = scmp.eq.s32.totalorder %s18, 0
      %p197 = por %p195, %p196
      %p198 = scmp.le.s32.totalorder 1, %s12
      %p199 = scmp.lt.s32.totalorder %s12, 5
      %p200 = pnand %p198, %p199
      %p201 = pneg %p200
      // Predicated region
      $region9: #{channel_spatial_stage_pallas.1} parent=5 // pred_check
        _
      $region10: #{channel_spatial_stage_pallas.1} parent=5 // pred_check_branch
        %203 = sbr.rel (%p200) target = $region12
      $region11: #{channel_spatial_stage_pallas.1} parent=5 // pred_region
        %s204 = ssub.s32 %s12, 1
        // Predicated region
        $region13: #{channel_spatial_stage_pallas.1} parent=11 // pred_check
          %p205 = pneg %p99
        $region14: #{channel_spatial_stage_pallas.1} parent=11 // pred_check_branch
          %207 = sbr.rel (%p205) target = $region16
        $region15: #{channel_spatial_stage_pallas.1} parent=11 // pred_region
          _
        $region16: #{channel_spatial_stage_pallas.1} parent=11 // pred_fallthru
          _
        // Predicated region
        $region17: #{channel_spatial_stage_pallas.1} parent=11 // pred_check
          %p208 = pneg %p120
        $region18: #{channel_spatial_stage_pallas.1} parent=11 // pred_check_branch
          %210 = sbr.rel (%p208) target = $region20
        $region19: #{channel_spatial_stage_pallas.1} parent=11 // pred_region
          _
        $region20: #{channel_spatial_stage_pallas.1} parent=11 // pred_fallthru
          _
        // Predicated region
        $region21: #{channel_spatial_stage_pallas.1} parent=11 // pred_check
          %p211 = pneg %p141
        $region22: #{channel_spatial_stage_pallas.1} parent=11 // pred_check_branch
          %213 = sbr.rel (%p211) target = $region24
        $region23: #{channel_spatial_stage_pallas.1} parent=11 // pred_region
          _
        $region24: #{channel_spatial_stage_pallas.1} parent=11 // pred_fallthru
          _
        // Predicated region
        $region25: #{channel_spatial_stage_pallas.1} parent=11 // pred_check
          %p214 = pneg %p162
        $region26: #{channel_spatial_stage_pallas.1} parent=11 // pred_check_branch
          %216 = sbr.rel (%p214) target = $region28
        $region27: #{channel_spatial_stage_pallas.1} parent=11 // pred_region
          _
        $region28: #{channel_spatial_stage_pallas.1} parent=11 // pred_fallthru
          _
      $region12: #{channel_spatial_stage_pallas.1} parent=5 // pred_fallthru
        _
      %p217 = scmp.lt.s32.totalorder %s12, 4
      // Predicated region
      $region29: #{channel_spatial_stage_pallas.1} parent=5 // pred_check
        %p218 = pneg %p217
      $region30: #{channel_spatial_stage_pallas.1} parent=5 // pred_check_branch
        %220 = sbr.rel (%p218) target = $region32
      $region31: #{channel_spatial_stage_pallas.1} parent=5 // pred_region
        // Predicated region
        $region33: #{channel_spatial_stage_pallas.1} parent=31 // pred_check
          %p221 = pneg %p44
        $region34: #{channel_spatial_stage_pallas.1} parent=31 // pred_check_branch
          %223 = sbr.rel (%p221) target = $region36
        $region35: #{channel_spatial_stage_pallas.1} parent=31 // pred_region
          %p224 = scmp.lt.s32.totalorder %s19, 1
          %s225 = scalar_select %p224, %s19, 1
          %s226 = smul.addr %s225, 2
          %s227 = smul.addr %s226, 8
          %s228 = scalar_lea.vmem %s0, %s227
        $region36: #{channel_spatial_stage_pallas.1} parent=31 // pred_fallthru
          _
        // Predicated region
        $region37: #{channel_spatial_stage_pallas.1} parent=31 // pred_check
          %p229 = pneg %p72
        $region38: #{channel_spatial_stage_pallas.1} parent=31 // pred_check_branch
          %231 = sbr.rel (%p229) target = $region40
        $region39: #{channel_spatial_stage_pallas.1} parent=31 // pred_region
          %s232 = sand.u32 %s62, 1
          %s233 = sand.u32 %s62, 1
          %s234 = smul.addr %s233, 16
          %s235 = scalar_lea.vmem [#allocation2], %s234
          %s236 = smul.addr %s19, 8
          %s237 = sadd.s32 %s20, %s236
          %s238 = smul.addr %s237, 4
          %s239 = scalar_lea.vmem %s1, %s238
          // Predicated region
          $region41: #{channel_spatial_stage_pallas.1} parent=39 // pred_check
            _
          $region42: #{channel_spatial_stage_pallas.1} parent=39 // pred_check_branch
            %241 = sbr.rel (0) target = $region44
          $region43: #{channel_spatial_stage_pallas.1} parent=39 // pred_region
            // Predicated region
            $region45: #{channel_spatial_stage_pallas.1} parent=43 // pred_check
              _
            $region46: #{channel_spatial_stage_pallas.1} parent=43 // pred_check_branch
              %243 = sbr.rel target = $region48
            $region47: #{channel_spatial_stage_pallas.1} parent=43 // pred_region
              // Predicated region
              $region60: #{channel_spatial_stage_pallas.1} parent=47 // pred_check
                _
              $region61: #{channel_spatial_stage_pallas.1} parent=47 // pred_check_branch
                %265 = sbr.rel (0) target = $region63
              $region62: #{channel_spatial_stage_pallas.1} parent=47 // pred_region
                loop: start=0, step=1, limit=1
                $region64: #{channel_spatial_stage_pallas.1} parent=62 // loop_pre_header
                  _
                $region65: #{channel_spatial_stage_pallas.1} parent=62 // loop_header
                  %s267 = sphi 0, %s271
                  %p268 = scmp.ge.s32.totalorder %s267, 1
                  %s272 = sphi %s239, %s239
                  %s273 = sphi %s235, %s235
                $region66: #{channel_spatial_stage_pallas.1} parent=62 // loop_header_branch
                  %270 = sbr.rel (%p268) target = $region70
                $region67: #{channel_spatial_stage_pallas.1} parent=62 // loop_body
                  _
                $region68: #{channel_spatial_stage_pallas.1} parent=62 // loop_footer
                  %s271 = sadd.s32 1, %s267
                $region69: #{channel_spatial_stage_pallas.1} parent=62 // loop_footer_branch
                  %266 = sbr.rel target = $region65
                $region70: #{channel_spatial_stage_pallas.1} parent=62 // loop_exit
                  _
                %s275 = ssub.s32 16, 1
                loop: start=0, step=1, limit=1
                $region71: #{channel_spatial_stage_pallas.1} parent=62 // loop_pre_header
                  _
                $region72: #{channel_spatial_stage_pallas.1} parent=62 // loop_header
                  %s277 = sphi 0, %s281
                  %p278 = scmp.ge.s32.totalorder %s277, 1
                  %s282 = sphi %s239, %s239
                  %s283 = sphi %s235, %s235
                $region73: #{channel_spatial_stage_pallas.1} parent=62 // loop_header_branch
                  %280 = sbr.rel (%p278) target = $region77
                $region74: #{channel_spatial_stage_pallas.1} parent=62 // loop_body
                  %v284 = vld [vmem:[%s282] sm:%s275]
                  %285 = vst [vmem:[%s283] sm:%s275] %v284
                  %v286 = vld [vmem:[%s282 + $0x8] sm:%s275]
                  %287 = vst [vmem:[%s283 + $0x4] sm:%s275] %v286
                  %v288 = vld [vmem:[%s282 + $0x10] sm:%s275]
                  %289 = vst [vmem:[%s283 + $0x8] sm:%s275] %v288
                  %v290 = vld [vmem:[%s282 + $0x18] sm:%s275]
                  %291 = vst [vmem:[%s283 + $0xc] sm:%s275] %v290
                $region75: #{channel_spatial_stage_pallas.1} parent=62 // loop_footer
                  %s281 = sadd.s32 1, %s277
                $region76: #{channel_spatial_stage_pallas.1} parent=62 // loop_footer_branch
                  %276 = sbr.rel target = $region72
                $region77: #{channel_spatial_stage_pallas.1} parent=62 // loop_exit
                  _
              $region63: #{channel_spatial_stage_pallas.1} parent=47 // pred_fallthru
                _
            $region48: #{channel_spatial_stage_pallas.1} parent=43 // pred_fallthru
              _
            // Predicated region
            $region49: #{channel_spatial_stage_pallas.1} parent=43 // pred_check
              _
            $region50: #{channel_spatial_stage_pallas.1} parent=43 // pred_check_branch
              %245 = sbr.rel (0) target = $region52
            $region51: #{channel_spatial_stage_pallas.1} parent=43 // pred_region
              %s247 = ssub.s32 16, 1
              loop: start=0, step=1, limit=1
              $region53: #{channel_spatial_stage_pallas.1} parent=51 // loop_pre_header
                _
              $region54: #{channel_spatial_stage_pallas.1} parent=51 // loop_header
                %s249 = sphi 0, %s253
                %p250 = scmp.ge.s32.totalorder %s249, 1
                %s254 = sphi %s239, %s239
                %s255 = sphi %s235, %s235
              $region55: #{channel_spatial_stage_pallas.1} parent=51 // loop_header_branch
                %252 = sbr.rel (%p250) target = $region59
              $region56: #{channel_spatial_stage_pallas.1} parent=51 // loop_body
                %v256 = vld [vmem:[%s254] sm:%s247]
                %257 = vst [vmem:[%s255] sm:%s247] %v256
                %v258 = vld [vmem:[%s254 + $0x8] sm:%s247]
                %259 = vst [vmem:[%s255 + $0x4] sm:%s247] %v258
                %v260 = vld [vmem:[%s254 + $0x10] sm:%s247]
                %261 = vst [vmem:[%s255 + $0x8] sm:%s247] %v260
                %v262 = vld [vmem:[%s254 + $0x18] sm:%s247]
                %263 = vst [vmem:[%s255 + $0xc] sm:%s247] %v262
              $region57: #{channel_spatial_stage_pallas.1} parent=51 // loop_footer
                %s253 = sadd.s32 1, %s249
              $region58: #{channel_spatial_stage_pallas.1} parent=51 // loop_footer_branch
                %248 = sbr.rel target = $region54
              $region59: #{channel_spatial_stage_pallas.1} parent=51 // loop_exit
                _
            $region52: #{channel_spatial_stage_pallas.1} parent=43 // pred_fallthru
              _
          $region44: #{channel_spatial_stage_pallas.1} parent=39 // pred_fallthru
            _
          %292 = vnop
        $region40: #{channel_spatial_stage_pallas.1} parent=31 // pred_fallthru
          _
      $region32: #{channel_spatial_stage_pallas.1} parent=5 // pred_fallthru
        _
      %p293 = scmp.le.s32.totalorder 1, %s12
      %p294 = scmp.lt.s32.totalorder %s12, 5
      %p295 = pnand %p293, %p294
      %p296 = pneg %p295
      // Predicated region
      $region78: #{channel_spatial_stage_pallas.1} parent=5 // pred_check
        _
      $region79: #{channel_spatial_stage_pallas.1} parent=5 // pred_check_branch
        %298 = sbr.rel (%p295) target = $region81
      $region80: #{channel_spatial_stage_pallas.1} parent=5 // pred_region
        %s299 = ssub.s32 %s12, 1
        %s300 = sand.u32 %s65, 1
        %s301 = sand.u32 %s65, 1
        %s302 = smul.addr %s301, 16
        %s303 = scalar_lea.vmem [#allocation2], %s302
        // Predicated region
        $region82: #{channel_spatial_stage_pallas.1} parent=80 // pred_check
          %p304 = pneg %p78
        $region83: #{channel_spatial_stage_pallas.1} parent=80 // pred_check_branch
          %306 = sbr.rel (%p304) target = $region85
        $region84: #{channel_spatial_stage_pallas.1} parent=80 // pred_region
          _
        $region85: #{channel_spatial_stage_pallas.1} parent=80 // pred_fallthru
          _
        %p307 = scmp.lt.s32.totalorder %s21, 1
        %s308 = scalar_select %p307, %s21, 1
        %s309 = smul.addr %s308, 2
        %s310 = smul.addr %s309, 8
        %s311 = scalar_lea.vmem %s0, %s310
        %p312 = pneg %p50
        %p313 = pneg %p47
        %s314 = sand.u32 %s65, 1
        %s315 = sand.u32 %s65, 1
        %s316 = smul.addr %s315, 16
        %s317 = scalar_lea.vmem [#allocation2], %s316
        %p318 = pneg %p78
        %p319 = pneg %p75
        %p320 = pneg %p99
        %p321 = pneg %p96
        %p322 = pneg %p120
        %p323 = pneg %p117
        %p324 = pneg %p141
        %p325 = pneg %p138
        %p326 = pneg %p162
        %p327 = pneg %p159
        %p328 = pneg %p190
        %p329 = pneg %p187
        %s330 = sand.u32 %s177, 1
        %s331 = sand.u32 %s177, 1
        %s332 = smul.addr %s331, 16
        %s333 = scalar_lea.vmem [#allocation3], %s332
        %p334 = scmp.lt.s32.totalorder %s21, 1
        %s335 = scalar_select %p334, %s21, 1
        %s336 = smul.addr %s335, 2
        %s337 = smul.addr %s336, 8
        %s338 = scalar_lea.vmem %s0, %s337
        %v339 = vld [vmem:[%s338] sm:$0xff]
        %v340 = vld [vmem:[%s338 + $0x8] sm:$0xff]
        %v341 = vld [vmem:[%s303] sm:$0xf]
        %v342 = vld [vmem:[%s303 + $0x4] sm:$0xf]
        %v343 = vld [vmem:[%s303 + $0x8] sm:$0xf]
        %v344 = vld [vmem:[%s303 + $0xc] sm:$0xf]
        %v345 = vunpack.c.l.bf16 %v341
        %v346 = vunpack.c.l.bf16 %v342
        %v347 = vunpack.c.l.bf16 %v343
        %v348 = vunpack.c.l.bf16 %v344
        %350 = vset.pattern.permute.xlu0 0
        %351 = vperm.xlu0 %350, %v339
        %v352 = vpop.permute.xlu0 %351
        %355 = vset.pattern.permute.xlu0 0
        %356 = vperm.xlu0 %355, %v340
        %v357 = vpop.permute.xlu0 %356
        %v359 = vmul.f32 %v352, %v345
        %v360 = vmul.f32 %v357, %v346
        %v361 = vsub.f32 1.0, %v339
        %v362 = vsub.f32 1.0, %v340
        %364 = vset.pattern.permute.xlu0 0
        %365 = vperm.xlu0 %364, %v361
        %v366 = vpop.permute.xlu0 %365
        %369 = vset.pattern.permute.xlu0 0
        %370 = vperm.xlu0 %369, %v362
        %v371 = vpop.permute.xlu0 %370
        %v373 = vmul.f32 %v366, %v347
        %v374 = vmul.f32 %v371, %v348
        %v375 = vadd.f32 %v359, %v373
        %v376 = vadd.f32 %v360, %v374
        %v377 = vld [vmem:[%s2] sm:$0xff]
        %v378 = vld [vmem:[%s2 + $0x8] sm:$0xff]
        %v379 = vld [vmem:[%s3] sm:$0xff]
        %v380 = vld [vmem:[%s3 + $0x8] sm:$0xff]
        %382 = vset.pattern.permute.xlu0 0
        %383 = vperm.xlu0 %382, %v379
        %v384 = vpop.permute.xlu0 %383
        %387 = vset.pattern.permute.xlu0 0
        %388 = vperm.xlu0 %387, %v380
        %v389 = vpop.permute.xlu0 %388
        %vm391 = vcmask 130048
        %v393 = vsel %vm391, %v377, 0
        %v396 = vsel %vm391, %v378, 0
        %398 = vmatprep.subr.mxu0 0.0
        %399 = vmatpush1.msra.mxu0 0.0
        %400 = vmatprep.subr.mxu0 0.0
        %401 = vmatpush1.msra.mxu0 0.0
        %402 = vmatprep.subr.mxu0 0.0
        %403 = vmatpush1.msra.mxu0 0.0
        %404 = vmatprep.subr.mxu0 0.0
        %405 = vmatpush1.msra.mxu0 0.0
        %406 = vmatprep.subr.mxu0 0.0
        %407 = vmatpush1.msra.mxu0 0.0
        %408 = vmatprep.subr.mxu0 0.0
        %409 = vmatpush1.msra.mxu0 0.0
        %410 = vmatprep.subr.mxu0 0.0
        %411 = vmatpush1.msra.mxu0 0.0
        %412 = vmatprep.subr.mxu0 0.0
        %413 = vmatpush1.msra.mxu0 0.0
        %414 = vmatprep.subr.mxu0 0.0
        %415 = vmatpush1.msra.mxu0 0.0
        %416 = vmatprep.subr.mxu0 0.0
        %417 = vmatpush1.msra.mxu0 0.0
        %418 = vmatprep.subr.mxu0 0.0
        %419 = vmatpush1.msra.mxu0 0.0
        %420 = vmatprep.subr.mxu0 0.0
        %421 = vmatpush1.msra.mxu0 0.0
        %422 = vmatprep.subr.mxu0 0.0
        %423 = vmatpush1.msra.mxu0 0.0
        %424 = vmatprep.subr.mxu0 0.0
        %425 = vmatpush1.msra.mxu0 0.0
        %426 = vmatprep.subr.mxu0 0.0
        %427 = vmatpush1.msra.mxu0 %v376
        %428 = vmatprep.subr.mxu0 0.0
        %429 = vmatpush1.msra.mxu0 %v375
        %430 = vmatprep.subr.mxu0 0.0
        %431 = vmatpush2.msra.mxu0 0.0
        %432 = vmatprep.subr.mxu0 0.0
        %433 = vmatpush2.msra.mxu0 0.0
        %434 = vmatprep.subr.mxu0 0.0
        %435 = vmatpush2.msra.mxu0 0.0
        %436 = vmatprep.subr.mxu0 0.0
        %437 = vmatpush2.msra.mxu0 0.0
        %438 = vmatprep.subr.mxu0 0.0
        %439 = vmatpush2.msra.mxu0 0.0
        %440 = vmatprep.subr.mxu0 0.0
        %441 = vmatpush2.msra.mxu0 0.0
        %442 = vmatprep.subr.mxu0 0.0
        %443 = vmatpush2.msra.mxu0 0.0
        %444 = vmatprep.subr.mxu0 0.0
        %445 = vmatpush2.msra.mxu0 0.0
        %446 = vmatprep.subr.mxu0 0.0
        %447 = vmatpush2.msra.mxu0 0.0
        %448 = vmatprep.subr.mxu0 0.0
        %449 = vmatpush2.msra.mxu0 0.0
        %450 = vmatprep.subr.mxu0 0.0
        %451 = vmatpush2.msra.mxu0 0.0
        %452 = vmatprep.subr.mxu0 0.0
        %453 = vmatpush2.msra.mxu0 0.0
        %454 = vmatprep.subr.mxu0 0.0
        %455 = vmatpush2.msra.mxu0 0.0
        %456 = vmatprep.subr.mxu0 0.0
        %457 = vmatpush2.msra.mxu0 0.0
        %458 = vmatprep.subr.mxu0 0.0
        %459 = vmatpush2.msra.mxu0 0.0
        %460 = vmatprep.subr.mxu0 0.0
        %461 = vmatpush2.msra.mxu0 0.0
        %462 = vmatprep.mubr.f32.mxu0 0.0
        %463 = vmatmul.mubr.f32.gmra.mxu0 %v393
        %v464 = vpop.f32.mrf.mxu0
        %v465 = vadd.f32 %v384, %v464
        %v466 = vpop.f32.mrf.mxu0
        %467 = vmatprep.mubr.f32.mxu0 0.0
        %468 = vmatmul.mubr.f32.gmra.mxu0 %v396
        %v469 = vpop.f32.mrf.mxu0
        %v470 = vadd.f32 %v389, %v469
        %v471 = vpop.f32.mrf.mxu0
        %472 = vdwg.mxu0
        %v473 = vmax.f32 %v465, 0.0
        %v474 = vmax.f32 %v470, 0.0
        %v475 = vld [vmem:[%s4] sm:$0xff]
        %v476 = vld [vmem:[%s4 + $0x8] sm:$0xff]
        %v477 = vld [vmem:[%s5] sm:$0xff]
        %v478 = vld [vmem:[%s5 + $0x8] sm:$0xff]
        %480 = vset.pattern.permute.xlu0 0
        %481 = vperm.xlu0 %480, %v477
        %v482 = vpop.permute.xlu0 %481
        %485 = vset.pattern.permute.xlu0 0
        %486 = vperm.xlu0 %485, %v478
        %v487 = vpop.permute.xlu0 %486
        %v490 = vsel %vm391, %v475, 0
        %v493 = vsel %vm391, %v476, 0
        %495 = vmatprep.subr.mxu0 0.0
        %496 = vmatpush1.msra.mxu0 0.0
        %497 = vmatprep.subr.mxu0 0.0
        %498 = vmatpush1.msra.mxu0 0.0
        %499 = vmatprep.subr.mxu0 0.0
        %500 = vmatpush1.msra.mxu0 0.0
        %501 = vmatprep.subr.mxu0 0.0
        %502 = vmatpush1.msra.mxu0 0.0
        %503 = vmatprep.subr.mxu0 0.0
        %504 = vmatpush1.msra.mxu0 0.0
        %505 = vmatprep.subr.mxu0 0.0
        %506 = vmatpush1.msra.mxu0 0.0
        %507 = vmatprep.subr.mxu0 0.0
        %508 = vmatpush1.msra.mxu0 0.0
        %509 = vmatprep.subr.mxu0 0.0
        %510 = vmatpush1.msra.mxu0 0.0
        %511 = vmatprep.subr.mxu0 0.0
        %512 = vmatpush1.msra.mxu0 0.0
        %513 = vmatprep.subr.mxu0 0.0
        %514 = vmatpush1.msra.mxu0 0.0
        %515 = vmatprep.subr.mxu0 0.0
        %516 = vmatpush1.msra.mxu0 0.0
        %517 = vmatprep.subr.mxu0 0.0
        %518 = vmatpush1.msra.mxu0 0.0
        %519 = vmatprep.subr.mxu0 0.0
        %520 = vmatpush1.msra.mxu0 0.0
        %521 = vmatprep.subr.mxu0 0.0
        %522 = vmatpush1.msra.mxu0 0.0
        %523 = vmatprep.subr.mxu0 0.0
        %524 = vmatpush1.msra.mxu0 %v474
        %525 = vmatprep.subr.mxu0 0.0
        %526 = vmatpush1.msra.mxu0 %v473
        %527 = vmatprep.subr.mxu0 0.0
        %528 = vmatpush2.msra.mxu0 0.0
        %529 = vmatprep.subr.mxu0 0.0
        %530 = vmatpush2.msra.mxu0 0.0
        %531 = vmatprep.subr.mxu0 0.0
        %532 = vmatpush2.msra.mxu0 0.0
        %533 = vmatprep.subr.mxu0 0.0
        %534 = vmatpush2.msra.mxu0 0.0
        %535 = vmatprep.subr.mxu0 0.0
        %536 = vmatpush2.msra.mxu0 0.0
        %537 = vmatprep.subr.mxu0 0.0
        %538 = vmatpush2.msra.mxu0 0.0
        %539 = vmatprep.subr.mxu0 0.0
        %540 = vmatpush2.msra.mxu0 0.0
        %541 = vmatprep.subr.mxu0 0.0
        %542 = vmatpush2.msra.mxu0 0.0
        %543 = vmatprep.subr.mxu0 0.0
        %544 = vmatpush2.msra.mxu0 0.0
        %545 = vmatprep.subr.mxu0 0.0
        %546 = vmatpush2.msra.mxu0 0.0
        %547 = vmatprep.subr.mxu0 0.0
        %548 = vmatpush2.msra.mxu0 0.0
        %549 = vmatprep.subr.mxu0 0.0
        %550 = vmatpush2.msra.mxu0 0.0
        %551 = vmatprep.subr.mxu0 0.0
        %552 = vmatpush2.msra.mxu0 0.0
        %553 = vmatprep.subr.mxu0 0.0
        %554 = vmatpush2.msra.mxu0 0.0
        %555 = vmatprep.subr.mxu0 0.0
        %556 = vmatpush2.msra.mxu0 0.0
        %557 = vmatprep.subr.mxu0 0.0
        %558 = vmatpush2.msra.mxu0 0.0
        %559 = vmatprep.mubr.f32.mxu0 0.0
        %560 = vmatmul.mubr.f32.gmra.mxu0 %v490
        %v561 = vpop.f32.mrf.mxu0
        %v562 = vadd.f32 %v482, %v561
        %v563 = vpop.f32.mrf.mxu0
        %564 = vmatprep.mubr.f32.mxu0 0.0
        %565 = vmatmul.mubr.f32.gmra.mxu0 %v493
        %v566 = vpop.f32.mrf.mxu0
        %v567 = vadd.f32 %v487, %v566
        %v568 = vpop.f32.mrf.mxu0
        %569 = vdwg.mxu0
        %v570 = vxor.u32 %v562, 2147483648
        %v571 = vxor.u32 %v567, 2147483648
        %v572 = vmul.f32 %v570, 1.442695
        %v573 = vpow.pop %v572
        %v574 = vmul.f32 %v571, 1.442695
        %v575 = vpow.pop %v574
        %v576 = vadd.f32 %v573, 1.0
        %v577 = vadd.f32 %v575, 1.0
        %v578 = vrcp.pop %v576
        %v579 = vmul.f32 1.0, %v578
        %v580 = vrcp.pop %v577
        %v581 = vmul.f32 1.0, %v580
        %v582 = vsub.f32 %v359, %v373
        %v583 = vsub.f32 %v360, %v374
        %v584 = vmul.f32 %v579, %v582
        %v585 = vmul.f32 %v581, %v583
        %v586 = vadd.f32 %v373, %v584
        %v587 = vadd.f32 %v374, %v585
        %588 = vst [vmem:[%s333] sm:$0xff] %v586
        %589 = vst [vmem:[%s333 + $0x8] sm:$0xff] %v587
        %s590 = sand.u32 %s177, 1
        %s591 = sand.u32 %s177, 1
        %s592 = smul.addr %s591, 16
        %s593 = scalar_lea.vmem [#allocation3], %s592
        // Predicated region
        $region86: #{channel_spatial_stage_pallas.1} parent=80 // pred_check
          %p594 = pneg %p187
        $region87: #{channel_spatial_stage_pallas.1} parent=80 // pred_check_branch
          %596 = sbr.rel (%p594) target = $region89
        $region88: #{channel_spatial_stage_pallas.1} parent=80 // pred_region
          %s597 = smul.addr %s21, 4
          %s598 = sadd.s32 %s22, %s597
          %s599 = smul.addr %s598, 8
          %s600 = scalar_lea.vmem %s6, %s599
          // Predicated region
          $region90: #{channel_spatial_stage_pallas.1} parent=88 // pred_check
            _
          $region91: #{channel_spatial_stage_pallas.1} parent=88 // pred_check_branch
            %602 = sbr.rel (0) target = $region93
          $region92: #{channel_spatial_stage_pallas.1} parent=88 // pred_region
            // Predicated region
            $region94: #{channel_spatial_stage_pallas.1} parent=92 // pred_check
              _
            $region95: #{channel_spatial_stage_pallas.1} parent=92 // pred_check_branch
              %604 = sbr.rel (0) target = $region97
            $region96: #{channel_spatial_stage_pallas.1} parent=92 // pred_region
              // Predicated region
              $region109: #{channel_spatial_stage_pallas.1} parent=96 // pred_check
                _
              $region110: #{channel_spatial_stage_pallas.1} parent=96 // pred_check_branch
                %622 = sbr.rel (0) target = $region112
              $region111: #{channel_spatial_stage_pallas.1} parent=96 // pred_region
                loop: start=0, step=1, limit=1
                $region113: #{channel_spatial_stage_pallas.1} parent=111 // loop_pre_header
                  _
                $region114: #{channel_spatial_stage_pallas.1} parent=111 // loop_header
                  %s624 = sphi 0, %s628
                  %p625 = scmp.ge.s32.totalorder %s624, 1
                  %s629 = sphi %s593, %s593
                  %s630 = sphi %s600, %s600
                $region115: #{channel_spatial_stage_pallas.1} parent=111 // loop_header_branch
                  %627 = sbr.rel (%p625) target = $region119
                $region116: #{channel_spatial_stage_pallas.1} parent=111 // loop_body
                  %v631 = vld [vmem:[%s629] sm:$0xff]
                  %632 = vst [vmem:[%s630] sm:$0xff] %v631
                  %v633 = vld [vmem:[%s629 + $0x8] sm:$0xff]
                  %634 = vst [vmem:[%s630 + $0x10] sm:$0xff] %v633
                $region117: #{channel_spatial_stage_pallas.1} parent=111 // loop_footer
                  %s628 = sadd.s32 1, %s624
                $region118: #{channel_spatial_stage_pallas.1} parent=111 // loop_footer_branch
                  %623 = sbr.rel target = $region114
                $region119: #{channel_spatial_stage_pallas.1} parent=111 // loop_exit
                  _
              $region112: #{channel_spatial_stage_pallas.1} parent=96 // pred_fallthru
                _
              // Predicated region
              $region120: #{channel_spatial_stage_pallas.1} parent=96 // pred_check
                _
              $region121: #{channel_spatial_stage_pallas.1} parent=96 // pred_check_branch
                %636 = sbr.rel target = $region123
              $region122: #{channel_spatial_stage_pallas.1} parent=96 // pred_region
                _
              $region123: #{channel_spatial_stage_pallas.1} parent=96 // pred_fallthru
                _
            $region97: #{channel_spatial_stage_pallas.1} parent=92 // pred_fallthru
              _
            // Predicated region
            $region98: #{channel_spatial_stage_pallas.1} parent=92 // pred_check
              _
            $region99: #{channel_spatial_stage_pallas.1} parent=92 // pred_check_branch
              %606 = sbr.rel target = $region101
            $region100: #{channel_spatial_stage_pallas.1} parent=92 // pred_region
              %s608 = ssub.s32 256, 1
              loop: start=0, step=1, limit=1
              $region102: #{channel_spatial_stage_pallas.1} parent=100 // loop_pre_header
                _
              $region103: #{channel_spatial_stage_pallas.1} parent=100 // loop_header
                %s610 = sphi 0, %s614
                %p611 = scmp.ge.s32.totalorder %s610, 1
                %s615 = sphi %s593, %s593
                %s616 = sphi %s600, %s600
              $region104: #{channel_spatial_stage_pallas.1} parent=100 // loop_header_branch
                %613 = sbr.rel (%p611) target = $region108
              $region105: #{channel_spatial_stage_pallas.1} parent=100 // loop_body
                %v617 = vld [vmem:[%s615] sm:%s608]
                %618 = vst [vmem:[%s616] sm:%s608] %v617
                %v619 = vld [vmem:[%s615 + $0x8] sm:%s608]
                %620 = vst [vmem:[%s616 + $0x10] sm:%s608] %v619
              $region106: #{channel_spatial_stage_pallas.1} parent=100 // loop_footer
                %s614 = sadd.s32 1, %s610
              $region107: #{channel_spatial_stage_pallas.1} parent=100 // loop_footer_branch
                %609 = sbr.rel target = $region103
              $region108: #{channel_spatial_stage_pallas.1} parent=100 // loop_exit
                _
            $region101: #{channel_spatial_stage_pallas.1} parent=92 // pred_fallthru
              _
          $region93: #{channel_spatial_stage_pallas.1} parent=88 // pred_fallthru
            _
          %637 = vnop
        $region89: #{channel_spatial_stage_pallas.1} parent=80 // pred_fallthru
          _
      $region81: #{channel_spatial_stage_pallas.1} parent=5 // pred_fallthru
        _
      %p638 = scmp.le.s32.totalorder 2, %s12
      // Predicated region
      $region124: #{channel_spatial_stage_pallas.1} parent=5 // pred_check
        %p639 = pneg %p638
      $region125: #{channel_spatial_stage_pallas.1} parent=5 // pred_check_branch
        %641 = sbr.rel (%p639) target = $region127
      $region126: #{channel_spatial_stage_pallas.1} parent=5 // pred_region
        %s642 = ssub.s32 %s12, 2
        // Predicated region
        $region128: #{channel_spatial_stage_pallas.1} parent=126 // pred_check
          %p643 = pneg %p193
        $region129: #{channel_spatial_stage_pallas.1} parent=126 // pred_check_branch
          %645 = sbr.rel (%p643) target = $region131
        $region130: #{channel_spatial_stage_pallas.1} parent=126 // pred_region
          %s646 = sand.u32 %s178, 1
          %s647 = sand.u32 %s178, 1
          %s648 = smul.addr %s647, 16
          %s649 = scalar_lea.vmem [#allocation3], %s648
        $region131: #{channel_spatial_stage_pallas.1} parent=126 // pred_fallthru
          _
      $region127: #{channel_spatial_stage_pallas.1} parent=5 // pred_fallthru
        _
    $region6: #{channel_spatial_stage_pallas.1} parent=1 // loop_footer
      %s16 = sadd.s32 1, %s12
    $region7: #{channel_spatial_stage_pallas.1} parent=1 // loop_footer_branch
      %11 = sbr.rel target = $region3
    $region8: #{channel_spatial_stage_pallas.1} parent=1 // loop_exit
      _

</llo_original>
